<compile_context>
chip_gen: v6e
topology: v6e:2x2x1
jax: 0.10.0
libtpu: 0.0.40
codegen_flags: <defaults>
</compile_context>

<pallas_src>
import functools

import jax
import jax.numpy as jnp
from jax.experimental import pallas as pl
from jax.experimental.pallas import tpu as pltpu


ARCH = (2, 3, 3, 2)            # default FFNet architecture
LANES = 128                    # vreg lane width
SUBLANES = 8                   # vreg sublane depth (f32)
DEFAULT_ROWS_PER_BLOCK = 1024  # 1024 rows x 128 lanes -> 1 MiB f32 input block (in_features=2)


def _round_up(x, m):
    return (x + m - 1) // m * m


def _vpu_linear(planes, w_ref, b_ref, relu):
    """One linear layer on the VPU (no MXU).

    planes: list of d_in dense (rows, 128) f32 planes (one per input feature).
    w_ref:  SMEM ref, shape (d_in, d_out).
    b_ref:  SMEM ref, shape (d_out,).
    Returns a list of d_out dense (rows, 128) f32 planes.
    """
    d_in, d_out = w_ref.shape
    outs = []
    for j in range(d_out):               # d_out <= 3: fully unrolled at trace time
        acc = w_ref[0, j] * planes[0]
        for k in range(1, d_in):         # d_in <= 3: fully unrolled at trace time
            acc = acc + w_ref[k, j] * planes[k]
        acc = acc + b_ref[j]
        if relu:
            acc = jnp.maximum(acc, 0.0)
        outs.append(acc)
    return outs


def _ffnet_kernel(x_ref, w0_ref, b0_ref, w1_ref, b1_ref, w2_ref, b2_ref, o_ref):
    """Fused forward pass: (linear -> ReLU) x 2 -> linear (last layer not activated).

    x_ref: VMEM (in_features, rows_blk, 128); o_ref: VMEM (out_features, rows_blk, 128).
    Weights/biases are whole-array SMEM refs (scalars read per output feature).
    """
    d_in = x_ref.shape[0]
    h = [x_ref[k].astype(jnp.float32) for k in range(d_in)]   # dense feature planes
    h = _vpu_linear(h, w0_ref, b0_ref, relu=True)
    h = _vpu_linear(h, w1_ref, b1_ref, relu=True)
    h = _vpu_linear(h, w2_ref, b2_ref, relu=False)
    for j in range(o_ref.shape[0]):
        o_ref[j] = h[j].astype(o_ref.dtype)                   # lane-dense, unmasked stores


@functools.partial(jax.jit, static_argnames=("rows_per_block",))
def ffnet_forward_feature_major(x_fm, params, *, rows_per_block=DEFAULT_ROWS_PER_BLOCK):
    """Preferred entry point: x_fm is (in_features, batch); returns (out_features, batch).

    Using this layout end-to-end avoids the two wrapper-side HBM transpose passes
    that ffnet_forward pays for PyTorch-layout compatibility.
    """
    (w0, b0), (w1, b1), (w2, b2) = params
    d_in, batch = x_fm.shape
    d_out = w2.shape[1]

    # Batch -> (rows, 128) lane tiles; rows block must be a multiple of 8 sublanes.
    rows = -(-batch // LANES)
    rows_blk = min(_round_up(rows_per_block, SUBLANES), _round_up(rows, SUBLANES))
    rows_pad = _round_up(rows, rows_blk)
    batch_pad = rows_pad * LANES

    if batch_pad != batch:
        x_fm = jnp.pad(x_fm, ((0, 0), (0, batch_pad - batch)))
    x3 = x_fm.reshape(d_in, rows_pad, LANES)

    smem = pl.BlockSpec(memory_space=pltpu.MemorySpace.SMEM)
    grid = (rows_pad // rows_blk,)

    y3 = pl.pallas_call(
        _ffnet_kernel,
        out_shape=jax.ShapeDtypeStruct((d_out, rows_pad, LANES), x_fm.dtype),
        grid=grid,
        in_specs=[
            pl.BlockSpec((d_in, rows_blk, LANES), lambda i: (0, i, 0)),
            smem, smem, smem, smem, smem, smem,
        ],
        out_specs=pl.BlockSpec((d_out, rows_blk, LANES), lambda i: (0, i, 0)),
        compiler_params=pltpu.CompilerParams(
            dimension_semantics=("parallel",)),   # v7x: shard batch blocks over both TCs
    )(x3, w0, b0, w1, b1, w2, b2)

    y_fm = y3.reshape(d_out, batch_pad)
    if batch_pad != batch:
        y_fm = y_fm[:, :batch]
    return y_fm


@functools.partial(jax.jit, static_argnames=("rows_per_block",))
def ffnet_forward(x, params, *, rows_per_block=DEFAULT_ROWS_PER_BLOCK):
    """PyTorch-layout wrapper: x is (batch, in_features); returns (batch, out_features).

    Note: the two transposes here are full HBM passes; for very large batches use
    ffnet_forward_feature_major directly (feature-major layout end-to-end).
    """
    y_fm = ffnet_forward_feature_major(x.T, params, rows_per_block=rows_per_block)
    return y_fm.T


def init_ffnet_params(key, arch=ARCH, dtype=jnp.float32):
    """Deterministic init mimicking PyTorch nn.Linear defaults:
    W, b ~ U(-1/sqrt(fan_in), 1/sqrt(fan_in)).
    Weights are stored as (in_features, out_features) for the kernel."""
    params = []
    for i in range(len(arch) - 1):
        fan_in, fan_out = arch[i], arch[i + 1]
        key, kw, kb = jax.random.split(key, 3)
        bound = 1.0 / jnp.sqrt(jnp.asarray(fan_in, dtype=jnp.float32))
        w = jax.random.uniform(kw, (fan_in, fan_out), dtype=dtype,
                               minval=-bound, maxval=bound)
        b = jax.random.uniform(kb, (fan_out,), dtype=dtype,
                               minval=-bound, maxval=bound)
        params.append((w, b))
    return params


def ffnet_reference(x, params):
    """Pure-JAX reference of the same forward pass (correctness check)."""
    h = x
    for i, (w, b) in enumerate(params):
        h = h @ w + b
        if i < len(params) - 1:
            h = jnp.maximum(h, 0.0)
    return h


if __name__ == "__main__":
    key = jax.random.PRNGKey(0)
    key, kx = jax.random.split(key)
    params = init_ffnet_params(key, ARCH)

    # Small example consistent with arch=(2, 3, 3, 2): (batch, in_features) = (8, 2).
    x = jax.random.normal(kx, (8, ARCH[0]), dtype=jnp.float32)
    out = jax.block_until_ready(ffnet_forward(x, params))
    ref = ffnet_reference(x, params)
    assert out.shape == (8, ARCH[-1])
    assert jnp.allclose(out, ref, atol=1e-5, rtol=1e-5)

    # Exercise the gridded / padded path: non-multiple-of-128 batch, forced small
    # blocks so the grid has multiple steps (3 blocks of 8 rows x 128 lanes).
    key, kx2 = jax.random.split(key)
    x2 = jax.random.normal(kx2, (3000, ARCH[0]), dtype=jnp.float32)
    out2 = jax.block_until_ready(ffnet_forward(x2, params, rows_per_block=8))
    ref2 = ffnet_reference(x2, params)
    assert out2.shape == (3000, ARCH[-1])
    assert jnp.allclose(out2, ref2, atol=1e-5, rtol=1e-5)

    print("KERNEL_OK")
</pallas_src>

<mosaic_0001>
module attributes {stable_mosaic.version = 11 : i64} {
  func.func @_ffnet_kernel(%arg0: i32, %arg1: memref<2x8x128xf32, #tpu.memory_space<vmem>>, %arg2: memref<2x3xf32, #tpu.memory_space<smem>>, %arg3: memref<3xf32, #tpu.memory_space<smem>>, %arg4: memref<3x3xf32, #tpu.memory_space<smem>>, %arg5: memref<3xf32, #tpu.memory_space<smem>>, %arg6: memref<3x2xf32, #tpu.memory_space<smem>>, %arg7: memref<2xf32, #tpu.memory_space<smem>>, %arg8: memref<2x8x128xf32, #tpu.memory_space<vmem>>) attributes {dimension_semantics = [#tpu.dimension_semantics<parallel>], iteration_bounds = array<i64: 1>, scalar_prefetch = 0 : i64, scratch_operands = 0 : i64, tpu.core_type = #tpu.core_type<tc>, window_params = [{transform_indices = @transform_0, window_bounds = array<i64: 2, 8, 128>}, {transform_indices = @transform_1, window_bounds = array<i64: 2, 3>}, {transform_indices = @transform_2, window_bounds = array<i64: 3>}, {transform_indices = @transform_3, window_bounds = array<i64: 3, 3>}, {transform_indices = @transform_4, window_bounds = array<i64: 3>}, {transform_indices = @transform_5, window_bounds = array<i64: 3, 2>}, {transform_indices = @transform_6, window_bounds = array<i64: 2>}, {transform_indices = @transform_7, window_bounds = array<i64: 2, 8, 128>}]} {
    %c0 = arith.constant 0 : index
    %c0_0 = arith.constant 0 : index
    %c0_1 = arith.constant 0 : index
    %0 = vector.load %arg1[%c0, %c0_0, %c0_1] : memref<2x8x128xf32, #tpu.memory_space<vmem>>, vector<1x8x128xf32>
    %1 = vector.shape_cast %0 : vector<1x8x128xf32> to vector<8x128xf32>
    %c1 = arith.constant 1 : index
    %c0_2 = arith.constant 0 : index
    %c0_3 = arith.constant 0 : index
    %2 = vector.load %arg1[%c1, %c0_2, %c0_3] : memref<2x8x128xf32, #tpu.memory_space<vmem>>, vector<1x8x128xf32>
    %3 = vector.shape_cast %2 : vector<1x8x128xf32> to vector<8x128xf32>
    %c0_4 = arith.constant 0 : index
    %c0_5 = arith.constant 0 : index
    %4 = memref.load %arg2[%c0_4, %c0_5] : memref<2x3xf32, #tpu.memory_space<smem>>
    %5 = vector.broadcast %4 : f32 to vector<8x128xf32>
    %6 = arith.mulf %5, %1 : vector<8x128xf32>
    %c1_6 = arith.constant 1 : index
    %c0_7 = arith.constant 0 : index
    %7 = memref.load %arg2[%c1_6, %c0_7] : memref<2x3xf32, #tpu.memory_space<smem>>
    %8 = vector.broadcast %7 : f32 to vector<8x128xf32>
    %9 = arith.mulf %8, %3 : vector<8x128xf32>
    %10 = arith.addf %6, %9 : vector<8x128xf32>
    %c0_8 = arith.constant 0 : index
    %11 = memref.load %arg3[%c0_8] : memref<3xf32, #tpu.memory_space<smem>>
    %12 = vector.broadcast %11 : f32 to vector<8x128xf32>
    %13 = arith.addf %10, %12 : vector<8x128xf32>
    %cst = arith.constant 0.000000e+00 : f32
    %14 = vector.broadcast %cst : f32 to vector<8x128xf32>
    %15 = arith.maximumf %13, %14 : vector<8x128xf32>
    %c0_9 = arith.constant 0 : index
    %c1_10 = arith.constant 1 : index
    %16 = memref.load %arg2[%c0_9, %c1_10] : memref<2x3xf32, #tpu.memory_space<smem>>
    %17 = vector.broadcast %16 : f32 to vector<8x128xf32>
    %18 = arith.mulf %17, %1 : vector<8x128xf32>
    %c1_11 = arith.constant 1 : index
    %c1_12 = arith.constant 1 : index
    %19 = memref.load %arg2[%c1_11, %c1_12] : memref<2x3xf32, #tpu.memory_space<smem>>
    %20 = vector.broadcast %19 : f32 to vector<8x128xf32>
    %21 = arith.mulf %20, %3 : vector<8x128xf32>
    %22 = arith.addf %18, %21 : vector<8x128xf32>
    %c1_13 = arith.constant 1 : index
    %23 = memref.load %arg3[%c1_13] : memref<3xf32, #tpu.memory_space<smem>>
    %24 = vector.broadcast %23 : f32 to vector<8x128xf32>
    %25 = arith.addf %22, %24 : vector<8x128xf32>
    %cst_14 = arith.constant 0.000000e+00 : f32
    %26 = vector.broadcast %cst_14 : f32 to vector<8x128xf32>
    %27 = arith.maximumf %25, %26 : vector<8x128xf32>
    %c0_15 = arith.constant 0 : index
    %c2 = arith.constant 2 : index
    %28 = memref.load %arg2[%c0_15, %c2] : memref<2x3xf32, #tpu.memory_space<smem>>
    %29 = vector.broadcast %28 : f32 to vector<8x128xf32>
    %30 = arith.mulf %29, %1 : vector<8x128xf32>
    %c1_16 = arith.constant 1 : index
    %c2_17 = arith.constant 2 : index
    %31 = memref.load %arg2[%c1_16, %c2_17] : memref<2x3xf32, #tpu.memory_space<smem>>
    %32 = vector.broadcast %31 : f32 to vector<8x128xf32>
    %33 = arith.mulf %32, %3 : vector<8x128xf32>
    %34 = arith.addf %30, %33 : vector<8x128xf32>
    %c2_18 = arith.constant 2 : index
    %35 = memref.load %arg3[%c2_18] : memref<3xf32, #tpu.memory_space<smem>>
    %36 = vector.broadcast %35 : f32 to vector<8x128xf32>
    %37 = arith.addf %34, %36 : vector<8x128xf32>
    %cst_19 = arith.constant 0.000000e+00 : f32
    %38 = vector.broadcast %cst_19 : f32 to vector<8x128xf32>
    %39 = arith.maximumf %37, %38 : vector<8x128xf32>
    %c0_20 = arith.constant 0 : index
    %c0_21 = arith.constant 0 : index
    %40 = memref.load %arg4[%c0_20, %c0_21] : memref<3x3xf32, #tpu.memory_space<smem>>
    %41 = vector.broadcast %40 : f32 to vector<8x128xf32>
    %42 = arith.mulf %41, %15 : vector<8x128xf32>
    %c1_22 = arith.constant 1 : index
    %c0_23 = arith.constant 0 : index
    %43 = memref.load %arg4[%c1_22, %c0_23] : memref<3x3xf32, #tpu.memory_space<smem>>
    %44 = vector.broadcast %43 : f32 to vector<8x128xf32>
    %45 = arith.mulf %44, %27 : vector<8x128xf32>
    %46 = arith.addf %42, %45 : vector<8x128xf32>
    %c2_24 = arith.constant 2 : index
    %c0_25 = arith.constant 0 : index
    %47 = memref.load %arg4[%c2_24, %c0_25] : memref<3x3xf32, #tpu.memory_space<smem>>
    %48 = vector.broadcast %47 : f32 to vector<8x128xf32>
    %49 = arith.mulf %48, %39 : vector<8x128xf32>
    %50 = arith.addf %46, %49 : vector<8x128xf32>
    %c0_26 = arith.constant 0 : index
    %51 = memref.load %arg5[%c0_26] : memref<3xf32, #tpu.memory_space<smem>>
    %52 = vector.broadcast %51 : f32 to vector<8x128xf32>
    %53 = arith.addf %50, %52 : vector<8x128xf32>
    %cst_27 = arith.constant 0.000000e+00 : f32
    %54 = vector.broadcast %cst_27 : f32 to vector<8x128xf32>
    %55 = arith.maximumf %53, %54 : vector<8x128xf32>
    %c0_28 = arith.constant 0 : index
    %c1_29 = arith.constant 1 : index
    %56 = memref.load %arg4[%c0_28, %c1_29] : memref<3x3xf32, #tpu.memory_space<smem>>
    %57 = vector.broadcast %56 : f32 to vector<8x128xf32>
    %58 = arith.mulf %57, %15 : vector<8x128xf32>
    %c1_30 = arith.constant 1 : index
    %c1_31 = arith.constant 1 : index
    %59 = memref.load %arg4[%c1_30, %c1_31] : memref<3x3xf32, #tpu.memory_space<smem>>
    %60 = vector.broadcast %59 : f32 to vector<8x128xf32>
    %61 = arith.mulf %60, %27 : vector<8x128xf32>
    %62 = arith.addf %58, %61 : vector<8x128xf32>
    %c2_32 = arith.constant 2 : index
    %c1_33 = arith.constant 1 : index
    %63 = memref.load %arg4[%c2_32, %c1_33] : memref<3x3xf32, #tpu.memory_space<smem>>
    %64 = vector.broadcast %63 : f32 to vector<8x128xf32>
    %65 = arith.mulf %64, %39 : vector<8x128xf32>
    %66 = arith.addf %62, %65 : vector<8x128xf32>
    %c1_34 = arith.constant 1 : index
    %67 = memref.load %arg5[%c1_34] : memref<3xf32, #tpu.memory_space<smem>>
    %68 = vector.broadcast %67 : f32 to vector<8x128xf32>
    %69 = arith.addf %66, %68 : vector<8x128xf32>
    %cst_35 = arith.constant 0.000000e+00 : f32
    %70 = vector.broadcast %cst_35 : f32 to vector<8x128xf32>
    %71 = arith.maximumf %69, %70 : vector<8x128xf32>
    %c0_36 = arith.constant 0 : index
    %c2_37 = arith.constant 2 : index
    %72 = memref.load %arg4[%c0_36, %c2_37] : memref<3x3xf32, #tpu.memory_space<smem>>
    %73 = vector.broadcast %72 : f32 to vector<8x128xf32>
    %74 = arith.mulf %73, %15 : vector<8x128xf32>
    %c1_38 = arith.constant 1 : index
    %c2_39 = arith.constant 2 : index
    %75 = memref.load %arg4[%c1_38, %c2_39] : memref<3x3xf32, #tpu.memory_space<smem>>
    %76 = vector.broadcast %75 : f32 to vector<8x128xf32>
    %77 = arith.mulf %76, %27 : vector<8x128xf32>
    %78 = arith.addf %74, %77 : vector<8x128xf32>
    %c2_40 = arith.constant 2 : index
    %c2_41 = arith.constant 2 : index
    %79 = memref.load %arg4[%c2_40, %c2_41] : memref<3x3xf32, #tpu.memory_space<smem>>
    %80 = vector.broadcast %79 : f32 to vector<8x128xf32>
    %81 = arith.mulf %80, %39 : vector<8x128xf32>
    %82 = arith.addf %78, %81 : vector<8x128xf32>
    %c2_42 = arith.constant 2 : index
    %83 = memref.load %arg5[%c2_42] : memref<3xf32, #tpu.memory_space<smem>>
    %84 = vector.broadcast %83 : f32 to vector<8x128xf32>
    %85 = arith.addf %82, %84 : vector<8x128xf32>
    %cst_43 = arith.constant 0.000000e+00 : f32
    %86 = vector.broadcast %cst_43 : f32 to vector<8x128xf32>
    %87 = arith.maximumf %85, %86 : vector<8x128xf32>
    %c0_44 = arith.constant 0 : index
    %c0_45 = arith.constant 0 : index
    %88 = memref.load %arg6[%c0_44, %c0_45] : memref<3x2xf32, #tpu.memory_space<smem>>
    %89 = vector.broadcast %88 : f32 to vector<8x128xf32>
    %90 = arith.mulf %89, %55 : vector<8x128xf32>
    %c1_46 = arith.constant 1 : index
    %c0_47 = arith.constant 0 : index
    %91 = memref.load %arg6[%c1_46, %c0_47] : memref<3x2xf32, #tpu.memory_space<smem>>
    %92 = vector.broadcast %91 : f32 to vector<8x128xf32>
    %93 = arith.mulf %92, %71 : vector<8x128xf32>
    %94 = arith.addf %90, %93 : vector<8x128xf32>
    %c2_48 = arith.constant 2 : index
    %c0_49 = arith.constant 0 : index
    %95 = memref.load %arg6[%c2_48, %c0_49] : memref<3x2xf32, #tpu.memory_space<smem>>
    %96 = vector.broadcast %95 : f32 to vector<8x128xf32>
    %97 = arith.mulf %96, %87 : vector<8x128xf32>
    %98 = arith.addf %94, %97 : vector<8x128xf32>
    %c0_50 = arith.constant 0 : index
    %99 = memref.load %arg7[%c0_50] : memref<2xf32, #tpu.memory_space<smem>>
    %100 = vector.broadcast %99 : f32 to vector<8x128xf32>
    %101 = arith.addf %98, %100 : vector<8x128xf32>
    %c0_51 = arith.constant 0 : index
    %c1_52 = arith.constant 1 : index
    %102 = memref.load %arg6[%c0_51, %c1_52] : memref<3x2xf32, #tpu.memory_space<smem>>
    %103 = vector.broadcast %102 : f32 to vector<8x128xf32>
    %104 = arith.mulf %103, %55 : vector<8x128xf32>
    %c1_53 = arith.constant 1 : index
    %c1_54 = arith.constant 1 : index
    %105 = memref.load %arg6[%c1_53, %c1_54] : memref<3x2xf32, #tpu.memory_space<smem>>
    %106 = vector.broadcast %105 : f32 to vector<8x128xf32>
    %107 = arith.mulf %106, %71 : vector<8x128xf32>
    %108 = arith.addf %104, %107 : vector<8x128xf32>
    %c2_55 = arith.constant 2 : index
    %c1_56 = arith.constant 1 : index
    %109 = memref.load %arg6[%c2_55, %c1_56] : memref<3x2xf32, #tpu.memory_space<smem>>
    %110 = vector.broadcast %109 : f32 to vector<8x128xf32>
    %111 = arith.mulf %110, %87 : vector<8x128xf32>
    %112 = arith.addf %108, %111 : vector<8x128xf32>
    %c1_57 = arith.constant 1 : index
    %113 = memref.load %arg7[%c1_57] : memref<2xf32, #tpu.memory_space<smem>>
    %114 = vector.broadcast %113 : f32 to vector<8x128xf32>
    %115 = arith.addf %112, %114 : vector<8x128xf32>
    %c0_58 = arith.constant 0 : index
    %c0_59 = arith.constant 0 : index
    %c0_60 = arith.constant 0 : index
    %116 = vector.load %arg8[%c0_58, %c0_59, %c0_60] : memref<2x8x128xf32, #tpu.memory_space<vmem>>, vector<1x8x128xf32>
    %117 = vector.shape_cast %116 : vector<1x8x128xf32> to vector<8x128xf32>
    %118 = vector.shape_cast %101 : vector<8x128xf32> to vector<1x8x128xf32>
    tpu.vector_store %arg8[%c0_58, %c0_59, %c0_60], %118 {strides = array<i32>} : memref<2x8x128xf32, #tpu.memory_space<vmem>>, vector<1x8x128xf32>,
    %c1_61 = arith.constant 1 : index
    %c0_62 = arith.constant 0 : index
    %c0_63 = arith.constant 0 : index
    %119 = vector.load %arg8[%c1_61, %c0_62, %c0_63] : memref<2x8x128xf32, #tpu.memory_space<vmem>>, vector<1x8x128xf32>
    %120 = vector.shape_cast %119 : vector<1x8x128xf32> to vector<8x128xf32>
    %121 = vector.shape_cast %115 : vector<8x128xf32> to vector<1x8x128xf32>
    tpu.vector_store %arg8[%c1_61, %c0_62, %c0_63], %121 {strides = array<i32>} : memref<2x8x128xf32, #tpu.memory_space<vmem>>, vector<1x8x128xf32>,
    return
  }
  func.func @transform_0(%arg0: i32) -> (i32, i32, i32) {
    %c0_i32 = arith.constant 0 : i32
    %c0_i32_0 = arith.constant 0 : i32
    %c0_i32_1 = arith.constant 0 : i32
    return %c0_i32, %arg0, %c0_i32_0 : i32, i32, i32
  }
  func.func @transform_1(%arg0: i32) -> (i32, i32) {
    %c0_i32 = arith.constant 0 : i32
    %c0_i32_0 = arith.constant 0 : i32
    %c0_i32_1 = arith.constant 0 : i32
    return %c0_i32, %c0_i32_0 : i32, i32
  }
  func.func @transform_2(%arg0: i32) -> i32 {
    %c0_i32 = arith.constant 0 : i32
    %c0_i32_0 = arith.constant 0 : i32
    return %c0_i32 : i32
  }
  func.func @transform_3(%arg0: i32) -> (i32, i32) {
    %c0_i32 = arith.constant 0 : i32
    %c0_i32_0 = arith.constant 0 : i32
    %c0_i32_1 = arith.constant 0 : i32
    return %c0_i32, %c0_i32_0 : i32, i32
  }
  func.func @transform_4(%arg0: i32) -> i32 {
    %c0_i32 = arith.constant 0 : i32
    %c0_i32_0 = arith.constant 0 : i32
    return %c0_i32 : i32
  }
  func.func @transform_5(%arg0: i32) -> (i32, i32) {
    %c0_i32 = arith.constant 0 : i32
    %c0_i32_0 = arith.constant 0 : i32
    %c0_i32_1 = arith.constant 0 : i32
    return %c0_i32, %c0_i32_0 : i32, i32
  }
  func.func @transform_6(%arg0: i32) -> i32 {
    %c0_i32 = arith.constant 0 : i32
    %c0_i32_0 = arith.constant 0 : i32
    return %c0_i32 : i32
  }
  func.func @transform_7(%arg0: i32) -> (i32, i32, i32) {
    %c0_i32 = arith.constant 0 : i32
    %c0_i32_0 = arith.constant 0 : i32
    %c0_i32_1 = arith.constant 0 : i32
    return %c0_i32, %arg0, %c0_i32_0 : i32, i32, i32
  }
}

</mosaic_0001>

<llo_original>
// kernel: ffnet_forward_feature_major.1
$region0: #{ffnet_forward_feature_major.1}
  #allocation0 [shape = 'u32[]', space=smem, size = 0x4, offset = 0x4, fixed_abs, tag = 'smem constant byte address 0x4 - core index']
  #allocation1 [shape = 'u32[144,128]{1,0:T(1,128)}', space=vmem, size = 0x12000, scoped, tag = 'internal scratch']
  %s0 = inlined_call_operand.vmem [shape: f32[2,8,128], index: 0, kind: input, shape index: {}]
  %s1 = inlined_call_operand.vmem [shape: f32[2,3], index: 1, kind: input, shape index: {}]
  %s2 = inlined_call_operand.vmem [shape: f32[3], index: 2, kind: input, shape index: {}]
  %s3 = inlined_call_operand.vmem [shape: f32[3,3], index: 3, kind: input, shape index: {}]
  %s4 = inlined_call_operand.vmem [shape: f32[3], index: 4, kind: input, shape index: {}]
  %s5 = inlined_call_operand.vmem [shape: f32[3,2], index: 5, kind: input, shape index: {}]
  %s6 = inlined_call_operand.vmem [shape: f32[2], index: 6, kind: input, shape index: {}]
  %s7 = inlined_call_operand.vmem [shape: f32[2,8,128], index: 7, kind: output, shape index: {}]
  %s8 = sld [smem:[#allocation0]]
  $region62: #{ffnet_forward_feature_major.1} parent=0
    _
  %s10 = ssub.s32 1, %s8
  %s11 = scalar_select 0, %s10, %s8
  $region1: #{ffnet_forward_feature_major.1} parent=0
    #allocation2 [shape = 'u8[1024]{0}', space=smem, size = 0x400, scoped, tag = 'input window, operand 1, single buffered']
    #allocation3 [shape = 's32[1]{0}', space=sflag, size = 0x4, scoped, tag = 'scoped memory for ffnet_forward_feature_major.1']
    #allocation4 [shape = 'u8[512]{0}', space=smem, size = 0x200, scoped, tag = 'input window, operand 2, single buffered']
    #allocation5 [shape = 's32[1]{0}', space=sflag, size = 0x4, scoped, tag = 'scoped memory for ffnet_forward_feature_major.1']
    #allocation6 [shape = 'u8[2048]{0}', space=smem, size = 0x800, scoped, tag = 'input window, operand 3, single buffered']
    #allocation7 [shape = 'u8[512]{0}', space=smem, size = 0x200, scoped, tag = 'input window, operand 4, single buffered']
    #allocation8 [shape = 's32[1]{0}', space=sflag, size = 0x4, scoped, tag = 'scoped memory for ffnet_forward_feature_major.1']
    #allocation9 [shape = 'u8[2048]{0}', space=smem, size = 0x800, scoped, tag = 'input window, operand 5, single buffered']
    #allocation10 [shape = 'u8[512]{0}', space=smem, size = 0x200, scoped, tag = 'input window, operand 6, single buffered']
    #allocation11 [shape = 's32[1]{0}', space=sflag, size = 0x4, scoped, tag = 'scoped memory for ffnet_forward_feature_major.1']
    %12 = vsyncpa [#allocation3], 0
    %13 = vsyncpa [#allocation5], 0
    %14 = vsyncpa [#allocation8], 0
    %15 = vsyncpa [#allocation11], 0
    // Predicated region
    $region2: #{ffnet_forward_feature_major.1} parent=1 // pred_check
      _
    $region3: #{ffnet_forward_feature_major.1} parent=1 // pred_check_branch
      %17 = sbr.rel (0) target = $region5
    $region4: #{ffnet_forward_feature_major.1} parent=1 // pred_region
      _
    $region5: #{ffnet_forward_feature_major.1} parent=1 // pred_fallthru
      _
    // Predicated region
    $region6: #{ffnet_forward_feature_major.1} parent=1 // pred_check
      _
    $region7: #{ffnet_forward_feature_major.1} parent=1 // pred_check_branch
      %19 = sbr.rel (0) target = $region9
    $region8: #{ffnet_forward_feature_major.1} parent=1 // pred_region
      %s21 = ssub.s32 32, 32
      %22 = vsyncadd [#allocation3], %s21
      %s24 = sshll.u32 %s1, 4
      %s25 = int_to_ptr.vmem [resolvable:$true] %s24
      %27 = dma.vmem_to_smem %s25, 32, [#allocation2], [#allocation3]
    $region9: #{ffnet_forward_feature_major.1} parent=1 // pred_fallthru
      _
    // Predicated region
    $region10: #{ffnet_forward_feature_major.1} parent=1 // pred_check
      _
    $region11: #{ffnet_forward_feature_major.1} parent=1 // pred_check_branch
      %29 = sbr.rel (0) target = $region13
    $region12: #{ffnet_forward_feature_major.1} parent=1 // pred_region
      %s31 = ssub.s32 16, 16
      %32 = vsyncadd [#allocation5], %s31
      %s34 = sshll.u32 %s2, 4
      %s35 = int_to_ptr.vmem [resolvable:$true] %s34
      %37 = dma.vmem_to_smem %s35, 16, [#allocation4], [#allocation5]
    $region13: #{ffnet_forward_feature_major.1} parent=1 // pred_fallthru
      _
    // Predicated region
    $region14: #{ffnet_forward_feature_major.1} parent=1 // pred_check
      _
    $region15: #{ffnet_forward_feature_major.1} parent=1 // pred_check_branch
      %39 = sbr.rel (0) target = $region17
    $region16: #{ffnet_forward_feature_major.1} parent=1 // pred_region
      %s41 = ssub.s32 64, 64
      %42 = vsyncadd [#allocation5], %s41
      %s44 = sshll.u32 %s3, 4
      %s45 = int_to_ptr.vmem [resolvable:$true] %s44
      %47 = dma.vmem_to_smem %s45, 64, [#allocation6], [#allocation5]
    $region17: #{ffnet_forward_feature_major.1} parent=1 // pred_fallthru
      _
    // Predicated region
    $region18: #{ffnet_forward_feature_major.1} parent=1 // pred_check
      _
    $region19: #{ffnet_forward_feature_major.1} parent=1 // pred_check_branch
      %49 = sbr.rel (0) target = $region21
    $region20: #{ffnet_forward_feature_major.1} parent=1 // pred_region
      %s51 = ssub.s32 16, 16
      %52 = vsyncadd [#allocation8], %s51
      %s54 = sshll.u32 %s4, 4
      %s55 = int_to_ptr.vmem [resolvable:$true] %s54
      %57 = dma.vmem_to_smem %s55, 16, [#allocation7], [#allocation8]
    $region21: #{ffnet_forward_feature_major.1} parent=1 // pred_fallthru
      _
    // Predicated region
    $region22: #{ffnet_forward_feature_major.1} parent=1 // pred_check
      _
    $region23: #{ffnet_forward_feature_major.1} parent=1 // pred_check_branch
      %59 = sbr.rel (0) target = $region25
    $region24: #{ffnet_forward_feature_major.1} parent=1 // pred_region
      %s61 = ssub.s32 64, 64
      %62 = vsyncadd [#allocation8], %s61
      %s64 = sshll.u32 %s5, 4
      %s65 = int_to_ptr.vmem [resolvable:$true] %s64
      %67 = dma.vmem_to_smem %s65, 64, [#allocation9], [#allocation8]
    $region25: #{ffnet_forward_feature_major.1} parent=1 // pred_fallthru
      _
    // Predicated region
    $region26: #{ffnet_forward_feature_major.1} parent=1 // pred_check
      _
    $region27: #{ffnet_forward_feature_major.1} parent=1 // pred_check_branch
      %69 = sbr.rel (0) target = $region29
    $region28: #{ffnet_forward_feature_major.1} parent=1 // pred_region
      %s71 = ssub.s32 16, 16
      %72 = vsyncadd [#allocation11], %s71
      %s74 = sshll.u32 %s6, 4
      %s75 = int_to_ptr.vmem [resolvable:$true] %s74
      %77 = dma.vmem_to_smem %s75, 16, [#allocation10], [#allocation11]
    $region29: #{ffnet_forward_feature_major.1} parent=1 // pred_fallthru
      _
    // Predicated region
    $region30: #{ffnet_forward_feature_major.1} parent=1 // pred_check
      _
    $region31: #{ffnet_forward_feature_major.1} parent=1 // pred_check_branch
      %79 = sbr.rel (0) target = $region33
    $region32: #{ffnet_forward_feature_major.1} parent=1 // pred_region
      %80 = dma.done [#allocation3], 32
    $region33: #{ffnet_forward_feature_major.1} parent=1 // pred_fallthru
      _
    // Predicated region
    $region34: #{ffnet_forward_feature_major.1} parent=1 // pred_check
      _
    $region35: #{ffnet_forward_feature_major.1} parent=1 // pred_check_branch
      %82 = sbr.rel (0) target = $region37
    $region36: #{ffnet_forward_feature_major.1} parent=1 // pred_region
      %83 = dma.done [#allocation5], 16
    $region37: #{ffnet_forward_feature_major.1} parent=1 // pred_fallthru
      _
    // Predicated region
    $region38: #{ffnet_forward_feature_major.1} parent=1 // pred_check
      _
    $region39: #{ffnet_forward_feature_major.1} parent=1 // pred_check_branch
      %85 = sbr.rel (0) target = $region41
    $region40: #{ffnet_forward_feature_major.1} parent=1 // pred_region
      %86 = dma.done [#allocation5], 64
    $region41: #{ffnet_forward_feature_major.1} parent=1 // pred_fallthru
      _
    // Predicated region
    $region42: #{ffnet_forward_feature_major.1} parent=1 // pred_check
      _
    $region43: #{ffnet_forward_feature_major.1} parent=1 // pred_check_branch
      %88 = sbr.rel (0) target = $region45
    $region44: #{ffnet_forward_feature_major.1} parent=1 // pred_region
      %89 = dma.done [#allocation8], 16
    $region45: #{ffnet_forward_feature_major.1} parent=1 // pred_fallthru
      _
    // Predicated region
    $region46: #{ffnet_forward_feature_major.1} parent=1 // pred_check
      _
    $region47: #{ffnet_forward_feature_major.1} parent=1 // pred_check_branch
      %91 = sbr.rel (0) target = $region49
    $region48: #{ffnet_forward_feature_major.1} parent=1 // pred_region
      %92 = dma.done [#allocation8], 64
    $region49: #{ffnet_forward_feature_major.1} parent=1 // pred_fallthru
      _
    // Predicated region
    $region50: #{ffnet_forward_feature_major.1} parent=1 // pred_check
      _
    $region51: #{ffnet_forward_feature_major.1} parent=1 // pred_check_branch
      %94 = sbr.rel (0) target = $region53
    $region52: #{ffnet_forward_feature_major.1} parent=1 // pred_region
      %95 = dma.done [#allocation11], 16
    $region53: #{ffnet_forward_feature_major.1} parent=1 // pred_fallthru
      _
    %96 = sfence
    %v97 = vld [vmem:[%s0] sm:$0xff]
    %s98 = scalar_lea.vmem %s0, 8
    %v99 = vld [vmem:[%s98] sm:$0xff]
    %s100 = sld [smem:[#allocation2]]
    %v101 = vstv %s100
    %v102 = vmul.f32 %v101, %v97
    %s103 = sld [smem:[#allocation2 + $0x80]]
    %v104 = vstv %s103
    %v105 = vmul.f32 %v104, %v99
    %v106 = vadd.f32 %v102, %v105
    %s107 = sld [smem:[#allocation4]]
    %v108 = vstv %s107
    %v109 = vadd.f32 %v106, %v108
    %v110 = vmax.f32 %v109, 0.0
    %s111 = sld [smem:[#allocation2 + $0x1]]
    %v112 = vstv %s111
    %v113 = vmul.f32 %v112, %v97
    %s114 = sld [smem:[#allocation2 + $0x81]]
    %v115 = vstv %s114
    %v116 = vmul.f32 %v115, %v99
    %v117 = vadd.f32 %v113, %v116
    %s118 = sld [smem:[#allocation4 + $0x1]]
    %v119 = vstv %s118
    %v120 = vadd.f32 %v117, %v119
    %v121 = vmax.f32 %v120, 0.0
    %s122 = sld [smem:[#allocation2 + $0x2]]
    %v123 = vstv %s122
    %v124 = vmul.f32 %v123, %v97
    %s125 = sld [smem:[#allocation2 + $0x82]]
    %v126 = vstv %s125
    %v127 = vmul.f32 %v126, %v99
    %v128 = vadd.f32 %v124, %v127
    %s129 = sld [smem:[#allocation4 + $0x2]]
    %v130 = vstv %s129
    %v131 = vadd.f32 %v128, %v130
    %v132 = vmax.f32 %v131, 0.0
    %s133 = sld [smem:[#allocation6]]
    %v134 = vstv %s133
    %v135 = vmul.f32 %v134, %v110
    %s136 = sld [smem:[#allocation6 + $0x80]]
    %v137 = vstv %s136
    %v138 = vmul.f32 %v137, %v121
    %v139 = vadd.f32 %v135, %v138
    %s140 = sld [smem:[#allocation6 + $0x100]]
    %v141 = vstv %s140
    %v142 = vmul.f32 %v141, %v132
    %v143 = vadd.f32 %v139, %v142
    %s144 = sld [smem:[#allocation7]]
    %v145 = vstv %s144
    %v146 = vadd.f32 %v143, %v145
    %v147 = vmax.f32 %v146, 0.0
    %s148 = sld [smem:[#allocation6 + $0x1]]
    %v149 = vstv %s148
    %v150 = vmul.f32 %v149, %v110
    %s151 = sld [smem:[#allocation6 + $0x81]]
    %v152 = vstv %s151
    %v153 = vmul.f32 %v152, %v121
    %v154 = vadd.f32 %v150, %v153
    %s155 = sld [smem:[#allocation6 + $0x101]]
    %v156 = vstv %s155
    %v157 = vmul.f32 %v156, %v132
    %v158 = vadd.f32 %v154, %v157
    %s159 = sld [smem:[#allocation7 + $0x1]]
    %v160 = vstv %s159
    %v161 = vadd.f32 %v158, %v160
    %v162 = vmax.f32 %v161, 0.0
    %s163 = sld [smem:[#allocation6 + $0x2]]
    %v164 = vstv %s163
    %v165 = vmul.f32 %v164, %v110
    %s166 = sld [smem:[#allocation6 + $0x82]]
    %v167 = vstv %s166
    %v168 = vmul.f32 %v167, %v121
    %v169 = vadd.f32 %v165, %v168
    %s170 = sld [smem:[#allocation6 + $0x102]]
    %v171 = vstv %s170
    %v172 = vmul.f32 %v171, %v132
    %v173 = vadd.f32 %v169, %v172
    %s174 = sld [smem:[#allocation7 + $0x2]]
    %v175 = vstv %s174
    %v176 = vadd.f32 %v173, %v175
    %v177 = vmax.f32 %v176, 0.0
    %s178 = sld [smem:[#allocation9]]
    %v179 = vstv %s178
    %v180 = vmul.f32 %v179, %v147
    %s181 = sld [smem:[#allocation9 + $0x80]]
    %v182 = vstv %s181
    %v183 = vmul.f32 %v182, %v162
    %v184 = vadd.f32 %v180, %v183
    %s185 = sld [smem:[#allocation9 + $0x100]]
    %v186 = vstv %s185
    %v187 = vmul.f32 %v186, %v177
    %v188 = vadd.f32 %v184, %v187
    %s189 = sld [smem:[#allocation10]]
    %v190 = vstv %s189
    %v191 = vadd.f32 %v188, %v190
    %s192 = sld [smem:[#allocation9 + $0x1]]
    %v193 = vstv %s192
    %v194 = vmul.f32 %v193, %v147
    %s195 = sld [smem:[#allocation9 + $0x81]]
    %v196 = vstv %s195
    %v197 = vmul.f32 %v196, %v162
    %v198 = vadd.f32 %v194, %v197
    %s199 = sld [smem:[#allocation9 + $0x101]]
    %v200 = vstv %s199
    %v201 = vmul.f32 %v200, %v177
    %v202 = vadd.f32 %v198, %v201
    %s203 = sld [smem:[#allocation10 + $0x1]]
    %v204 = vstv %s203
    %v205 = vadd.f32 %v202, %v204
    %206 = vst [vmem:[%s7] sm:$0xff] %v191
    %s207 = scalar_lea.vmem %s7, 8
    %208 = vst [vmem:[%s207] sm:$0xff] %v205
    // Predicated region
    $region54: #{ffnet_forward_feature_major.1} parent=1 // pred_check
      _
    $region55: #{ffnet_forward_feature_major.1} parent=1 // pred_check_branch
      %210 = sbr.rel (0) target = $region57
    $region56: #{ffnet_forward_feature_major.1} parent=1 // pred_region
      _
    $region57: #{ffnet_forward_feature_major.1} parent=1 // pred_fallthru
      _
    // Predicated region
    $region58: #{ffnet_forward_feature_major.1} parent=1 // pred_check
      _
    $region59: #{ffnet_forward_feature_major.1} parent=1 // pred_check_branch
      %212 = sbr.rel (0) target = $region61
    $region60: #{ffnet_forward_feature_major.1} parent=1 // pred_region
      _
    $region61: #{ffnet_forward_feature_major.1} parent=1 // pred_fallthru
      _
    %213 = vsyncpa [#allocation3], 1
    %214 = vsyncpa [#allocation5], 1
    %215 = vsyncpa [#allocation8], 1
    %216 = vsyncpa [#allocation11], 1

</llo_original>
